<compile_context>
chip_gen: v7x
topology: tpu7x:2x2x1
jax: 0.10.0
libtpu: 0.0.40
codegen_flags: <defaults>
</compile_context>

<pallas_src>
import jax
import jax.numpy as jnp
from jax.experimental import pallas as pl
from jax.experimental.pallas import tpu as pltpu

BN_EPS = 1e-5


# ----------------------------------------------------------------------------
# Kernel: one grid step = one rollout batch (B, in) -> (B, out)
# ----------------------------------------------------------------------------
def actor_kernel(x_ref, w1_ref, w2_ref, w3_ref, bng_ref, o_ref):
    # bng rows: 0=b1, 1=gamma, 2=beta, 3=b2, 4=b3 (first out_size lanes)
    fc1 = w1_ref.shape[1]
    fc2 = w2_ref.shape[1]
    out_size = w3_ref.shape[1]
    B = x_ref.shape[1]

    x = x_ref[0]                                      # (B, in)  f32
    b1 = bng_ref[0:1, :fc1]
    gamma = bng_ref[1:2, :fc1]
    beta = bng_ref[2:3, :fc1]
    b2 = bng_ref[3:4, :fc2]
    b3 = bng_ref[4:5, :out_size]

    # fc1 + ReLU  (bf16 MXU inputs, f32 accumulate)
    h1 = jnp.dot(x.astype(jnp.bfloat16), w1_ref[...],
                 preferred_element_type=jnp.float32) + b1
    h1 = jnp.maximum(h1, 0.0)                         # (B, fc1) f32

    # BatchNorm1d (training-mode, per-step batch, biased variance),
    # single-pass stats + folded into one scale/shift FMA.
    inv_b = 1.0 / B
    mean = jnp.sum(h1, axis=0, keepdims=True) * inv_b          # (1, fc1)
    ex2 = jnp.sum(h1 * h1, axis=0, keepdims=True) * inv_b      # (1, fc1)
    var = jnp.maximum(ex2 - mean * mean, 0.0)
    scale = gamma * jax.lax.rsqrt(var + BN_EPS)                 # EUP slot
    shift = beta - mean * scale
    h1n = h1 * scale + shift

    # fc2 + ReLU
    h2 = jnp.dot(h1n.astype(jnp.bfloat16), w2_ref[...],
                 preferred_element_type=jnp.float32) + b2
    h2 = jnp.maximum(h2, 0.0)                         # (B, fc2)

    # fc3 + tanh  (true out_size width; full-extent block, masked vst is cheap)
    y = jnp.dot(h2.astype(jnp.bfloat16), w3_ref[...],
                preferred_element_type=jnp.float32) + b3
    o_ref[0] = jnp.tanh(y)                            # (B, out_size)


# ----------------------------------------------------------------------------
# Wrappers
# ----------------------------------------------------------------------------
@jax.jit
def actor_forward_steps(states, w1, w2, w3, bng):
    """Fused multi-step forward.

    states: (T, B, in) f32 -- T independent rollout batches.
    Weights stay VMEM-resident across the T grid steps (constant block index).
    Returns (T, B, out_size) f32.
    """
    T, B, IN = states.shape
    fc1 = w1.shape[1]
    fc2 = w2.shape[1]
    out_size = w3.shape[1]
    bw = bng.shape[1]

    grid_spec = pltpu.PrefetchScalarGridSpec(
        num_scalar_prefetch=0,
        grid=(T,),
        in_specs=[
            pl.BlockSpec((1, B, IN), lambda t: (t, 0, 0)),    # per-step batch
            pl.BlockSpec((IN, fc1), lambda t: (0, 0)),        # resident
            pl.BlockSpec((fc1, fc2), lambda t: (0, 0)),       # resident
            pl.BlockSpec((fc2, out_size), lambda t: (0, 0)),  # resident
            pl.BlockSpec((8, bw), lambda t: (0, 0)),          # resident
        ],
        out_specs=pl.BlockSpec((1, B, out_size), lambda t: (t, 0, 0)),
    )
    return pl.pallas_call(
        actor_kernel,
        out_shape=jax.ShapeDtypeStruct((T, B, out_size), jnp.float32),
        grid_spec=grid_spec,
        compiler_params=pltpu.CompilerParams(
            dimension_semantics=("parallel",)),   # v7x: shard steps over 2 TCs
    )(states, w1, w2, w3, bng)


def actor_forward(state, packed):
    """Single-call forward, mirroring the torch module API.

    state: (B, input_size) f32 or (input_size,) (unsqueezed like the module).
    """
    if state.ndim == 1:
        state = state[None, :]
    out = actor_forward_steps(state[None], packed["w1"], packed["w2"],
                              packed["w3"], packed["bng"])
    return out[0]


# ----------------------------------------------------------------------------
# Parameter construction / packing
# ----------------------------------------------------------------------------
def init_actor_params(key, input_size, output_size, fc1_units=256, fc2_units=256):
    """Deterministic init mimicking ActorModel.reset_parameters().

    hidden_init() uses weight.size()[0] == out_features, so lim = 1/sqrt(out).
    Biases follow PyTorch's default Linear init: U(-1/sqrt(in), 1/sqrt(in)).
    Weights are stored transposed: (in_features, out_features). All f32 (raw).
    """
    ks = jax.random.split(key, 6)

    def unif(k, shape, lim):
        return jax.random.uniform(k, shape, jnp.float32, -lim, lim)

    lim1 = 1.0 / jnp.sqrt(fc1_units * 1.0)
    lim2 = 1.0 / jnp.sqrt(fc2_units * 1.0)
    return {
        "w1": unif(ks[0], (input_size, fc1_units), lim1),
        "b1": unif(ks[1], (1, fc1_units), 1.0 / jnp.sqrt(input_size * 1.0)),
        "w2": unif(ks[2], (fc1_units, fc2_units), lim2),
        "b2": unif(ks[3], (1, fc2_units), 1.0 / jnp.sqrt(fc1_units * 1.0)),
        "w3": unif(ks[4], (fc2_units, output_size), 0.003),
        "b3": unif(ks[5], (1, output_size), 1.0 / jnp.sqrt(fc2_units * 1.0)),
        "gamma": jnp.ones((1, fc1_units), jnp.float32),
        "beta": jnp.zeros((1, fc1_units), jnp.float32),
    }


def pack_actor_params(raw):
    """One-time layout prep: bf16 weights (true shapes), all 1-D params packed
    into one (8, width) f32 tile (rows: b1, gamma, beta, b2, b3)."""
    fc1 = raw["w1"].shape[1]
    fc2 = raw["w2"].shape[1]
    out_size = raw["w3"].shape[1]

    bw = max(fc1, fc2, out_size)
    bw = ((bw + 127) // 128) * 128          # lane-align the packed tile
    bng = jnp.zeros((8, bw), jnp.float32)
    bng = bng.at[0, :fc1].set(raw["b1"][0])
    bng = bng.at[1, :fc1].set(raw["gamma"][0])
    bng = bng.at[2, :fc1].set(raw["beta"][0])
    bng = bng.at[3, :fc2].set(raw["b2"][0])
    bng = bng.at[4, :out_size].set(raw["b3"][0])

    return {
        "w1": raw["w1"].astype(jnp.bfloat16),
        "w2": raw["w2"].astype(jnp.bfloat16),
        "w3": raw["w3"].astype(jnp.bfloat16),   # true (fc2, out_size) shape
        "bng": bng,
    }


# ----------------------------------------------------------------------------
# Pure-JAX references for correctness checks
# ----------------------------------------------------------------------------
def actor_forward_ref_bf16(state, raw):
    """Matches kernel numerics: bf16 matmul inputs, f32 accumulate."""
    if state.ndim == 1:
        state = state[None, :]
    h1 = jnp.dot(state.astype(jnp.bfloat16), raw["w1"].astype(jnp.bfloat16),
                 preferred_element_type=jnp.float32) + raw["b1"]
    h1 = jnp.maximum(h1, 0.0)
    mean = jnp.mean(h1, axis=0, keepdims=True)
    var = jnp.mean((h1 - mean) ** 2, axis=0, keepdims=True)
    h1n = (h1 - mean) / jnp.sqrt(var + BN_EPS) * raw["gamma"] + raw["beta"]
    h2 = jnp.dot(h1n.astype(jnp.bfloat16), raw["w2"].astype(jnp.bfloat16),
                 preferred_element_type=jnp.float32) + raw["b2"]
    h2 = jnp.maximum(h2, 0.0)
    return jnp.tanh(jnp.dot(h2.astype(jnp.bfloat16), raw["w3"].astype(jnp.bfloat16),
                            preferred_element_type=jnp.float32) + raw["b3"])


def actor_forward_ref_f32(state, raw):
    """Full-f32 reference (the original module semantics)."""
    if state.ndim == 1:
        state = state[None, :]
    h1 = jnp.maximum(state @ raw["w1"] + raw["b1"], 0.0)
    mean = jnp.mean(h1, axis=0, keepdims=True)
    var = jnp.mean((h1 - mean) ** 2, axis=0, keepdims=True)
    h1n = (h1 - mean) / jnp.sqrt(var + BN_EPS) * raw["gamma"] + raw["beta"]
    h2 = jnp.maximum(h1n @ raw["w2"] + raw["b2"], 0.0)
    return jnp.tanh(h2 @ raw["w3"] + raw["b3"])


# ----------------------------------------------------------------------------
if __name__ == "__main__":
    key = jax.random.PRNGKey(0)
    k_param, k_state = jax.random.split(key)

    INPUT_SIZE = 16    # air-hockey state vector
    OUTPUT_SIZE = 4    # action vector
    FC1, FC2 = 256, 256
    STEPS = 4          # fused rollout steps per pallas_call (weights resident)
    BATCH = 128        # MXU M-aligned per-step batch

    raw = init_actor_params(k_param, INPUT_SIZE, OUTPUT_SIZE, FC1, FC2)
    packed = pack_actor_params(raw)
    states = jax.random.normal(k_state, (STEPS, BATCH, INPUT_SIZE), jnp.float32)

    # Fused multi-step forward (primary path).
    out = actor_forward_steps(states, packed["w1"], packed["w2"],
                              packed["w3"], packed["bng"])
    out = jax.block_until_ready(out)
    assert out.shape == (STEPS, BATCH, OUTPUT_SIZE)

    # Tight check vs. a numerics-matched (bf16 matmul inputs) JAX reference.
    ref_bf16 = jax.vmap(lambda s: actor_forward_ref_bf16(s, raw))(states)
    assert jnp.allclose(out, ref_bf16, atol=5e-3, rtol=5e-3), \
        "mismatch vs bf16-matched JAX reference"

    # Loose check vs. the original full-f32 module semantics.
    ref_f32 = jax.vmap(lambda s: actor_forward_ref_f32(s, raw))(states)
    assert jnp.allclose(out, ref_f32, atol=5e-2, rtol=5e-2), \
        "mismatch vs f32 module reference"

    # Single-call API parity (mirrors module.forward on one batch).
    single = jax.block_until_ready(actor_forward(states[0], packed))
    assert single.shape == (BATCH, OUTPUT_SIZE)
    assert jnp.allclose(single, out[0], atol=1e-5, rtol=1e-5)

    print("KERNEL_OK")
</pallas_src>

<mosaic_0001>
module attributes {stable_mosaic.version = 11 : i64} {
  func.func @actor_kernel(%arg0: i32, %arg1: memref<1x128x16xf32, #tpu.memory_space<vmem>>, %arg2: memref<16x256xbf16, #tpu.memory_space<vmem>>, %arg3: memref<256x256xbf16, #tpu.memory_space<vmem>>, %arg4: memref<256x4xbf16, #tpu.memory_space<vmem>>, %arg5: memref<8x256xf32, #tpu.memory_space<vmem>>, %arg6: memref<1x128x4xf32, #tpu.memory_space<vmem>>) attributes {dimension_semantics = [#tpu.dimension_semantics<parallel>], iteration_bounds = array<i64: 4>, scalar_prefetch = 0 : i64, scratch_operands = 0 : i64, tpu.core_type = #tpu.core_type<tc>, window_params = [{transform_indices = @transform_0, window_bounds = array<i64: 1, 128, 16>}, {pipeline_mode = #tpu.pipeline_mode<synchronous>, transform_indices = @transform_1, window_bounds = array<i64: 16, 256>}, {pipeline_mode = #tpu.pipeline_mode<synchronous>, transform_indices = @transform_2, window_bounds = array<i64: 256, 256>}, {pipeline_mode = #tpu.pipeline_mode<synchronous>, transform_indices = @transform_3, window_bounds = array<i64: 256, 4>}, {pipeline_mode = #tpu.pipeline_mode<synchronous>, transform_indices = @transform_4, window_bounds = array<i64: 8, 256>}, {transform_indices = @transform_5, window_bounds = array<i64: 1, 128, 4>}]} {
    %c0 = arith.constant 0 : index
    %c0_0 = arith.constant 0 : index
    %c0_1 = arith.constant 0 : index
    %0 = vector.load %arg1[%c0, %c0_0, %c0_1] : memref<1x128x16xf32, #tpu.memory_space<vmem>>, vector<1x128x16xf32>
    %1 = vector.shape_cast %0 : vector<1x128x16xf32> to vector<128x16xf32>
    %c0_2 = arith.constant 0 : index
    %c0_3 = arith.constant 0 : index
    %2 = vector.load %arg5[%c0_2, %c0_3] : memref<8x256xf32, #tpu.memory_space<vmem>>, vector<1x256xf32>
    %c1 = arith.constant 1 : index
    %c0_4 = arith.constant 0 : index
    %3 = vector.load %arg5[%c1, %c0_4] : memref<8x256xf32, #tpu.memory_space<vmem>>, vector<1x256xf32>
    %c2 = arith.constant 2 : index
    %c0_5 = arith.constant 0 : index
    %4 = vector.load %arg5[%c2, %c0_5] : memref<8x256xf32, #tpu.memory_space<vmem>>, vector<1x256xf32>
    %c3 = arith.constant 3 : index
    %c0_6 = arith.constant 0 : index
    %5 = vector.load %arg5[%c3, %c0_6] : memref<8x256xf32, #tpu.memory_space<vmem>>, vector<1x256xf32>
    %c4 = arith.constant 4 : index
    %c0_7 = arith.constant 0 : index
    %6 = vector.load %arg5[%c4, %c0_7] : memref<8x256xf32, #tpu.memory_space<vmem>>, vector<1x4xf32>
    %7 = arith.truncf %1 : vector<128x16xf32> to vector<128x16xbf16>
    %c0_8 = arith.constant 0 : index
    %c0_9 = arith.constant 0 : index
    %8 = vector.load %arg2[%c0_8, %c0_9] : memref<16x256xbf16, #tpu.memory_space<vmem>>, vector<16x256xbf16>
    %cst = arith.constant dense<0.000000e+00> : vector<128x256xf32>
    %9 = tpu.matmul %7, %8, %cst {dimension_numbers = #tpu.dot_dimension_numbers<[1], [0], [0], [1], [0, 0, 1, 1], [], []>} : vector<128x16xbf16>, vector<16x256xbf16>, vector<128x256xf32> -> vector<128x256xf32>
    %10 = vector.broadcast %2 : vector<1x256xf32> to vector<128x256xf32>
    %11 = arith.addf %9, %10 : vector<128x256xf32>
    %cst_10 = arith.constant 0.000000e+00 : f32
    %12 = vector.broadcast %cst_10 : f32 to vector<128x256xf32>
    %13 = arith.maximumf %11, %12 : vector<128x256xf32>
    %cst_11 = arith.constant dense<0.000000e+00> : vector<256xf32>
    %14 = vector.multi_reduction <add>, %13, %cst_11 [0] : vector<128x256xf32> to vector<256xf32>
    %15 = vector.shape_cast %14 : vector<256xf32> to vector<1x256xf32>
    %cst_12 = arith.constant 7.812500e-03 : f32
    %16 = vector.broadcast %cst_12 : f32 to vector<1x256xf32>
    %17 = arith.mulf %15, %16 : vector<1x256xf32>
    %18 = arith.mulf %13, %13 : vector<128x256xf32>
    %cst_13 = arith.constant dense<0.000000e+00> : vector<256xf32>
    %19 = vector.multi_reduction <add>, %18, %cst_13 [0] : vector<128x256xf32> to vector<256xf32>
    %20 = vector.shape_cast %19 : vector<256xf32> to vector<1x256xf32>
    %cst_14 = arith.constant 7.812500e-03 : f32
    %21 = vector.broadcast %cst_14 : f32 to vector<1x256xf32>
    %22 = arith.mulf %20, %21 : vector<1x256xf32>
    %23 = arith.mulf %17, %17 : vector<1x256xf32>
    %24 = arith.subf %22, %23 : vector<1x256xf32>
    %cst_15 = arith.constant 0.000000e+00 : f32
    %25 = vector.broadcast %cst_15 : f32 to vector<1x256xf32>
    %26 = arith.maximumf %24, %25 : vector<1x256xf32>
    %cst_16 = arith.constant 9.99999974E-6 : f32
    %27 = vector.broadcast %cst_16 : f32 to vector<1x256xf32>
    %28 = arith.addf %26, %27 : vector<1x256xf32>
    %29 = math.rsqrt %28 : vector<1x256xf32>
    %30 = arith.mulf %3, %29 : vector<1x256xf32>
    %31 = arith.mulf %17, %30 : vector<1x256xf32>
    %32 = arith.subf %4, %31 : vector<1x256xf32>
    %33 = vector.broadcast %30 : vector<1x256xf32> to vector<128x256xf32>
    %34 = arith.mulf %13, %33 : vector<128x256xf32>
    %35 = vector.broadcast %32 : vector<1x256xf32> to vector<128x256xf32>
    %36 = arith.addf %34, %35 : vector<128x256xf32>
    %37 = arith.truncf %36 : vector<128x256xf32> to vector<128x256xbf16>
    %c0_17 = arith.constant 0 : index
    %c0_18 = arith.constant 0 : index
    %38 = vector.load %arg3[%c0_17, %c0_18] : memref<256x256xbf16, #tpu.memory_space<vmem>>, vector<256x256xbf16>
    %cst_19 = arith.constant dense<0.000000e+00> : vector<128x256xf32>
    %39 = tpu.matmul %37, %38, %cst_19 {dimension_numbers = #tpu.dot_dimension_numbers<[1], [0], [0], [1], [0, 0, 1, 1], [], []>} : vector<128x256xbf16>, vector<256x256xbf16>, vector<128x256xf32> -> vector<128x256xf32>
    %40 = vector.broadcast %5 : vector<1x256xf32> to vector<128x256xf32>
    %41 = arith.addf %39, %40 : vector<128x256xf32>
    %cst_20 = arith.constant 0.000000e+00 : f32
    %42 = vector.broadcast %cst_20 : f32 to vector<128x256xf32>
    %43 = arith.maximumf %41, %42 : vector<128x256xf32>
    %44 = arith.truncf %43 : vector<128x256xf32> to vector<128x256xbf16>
    %c0_21 = arith.constant 0 : index
    %c0_22 = arith.constant 0 : index
    %45 = vector.load %arg4[%c0_21, %c0_22] : memref<256x4xbf16, #tpu.memory_space<vmem>>, vector<256x4xbf16>
    %cst_23 = arith.constant dense<0.000000e+00> : vector<128x4xf32>
    %46 = tpu.matmul %44, %45, %cst_23 {dimension_numbers = #tpu.dot_dimension_numbers<[1], [0], [0], [1], [0, 0, 1, 1], [], []>} : vector<128x256xbf16>, vector<256x4xbf16>, vector<128x4xf32> -> vector<128x4xf32>
    %47 = vector.broadcast %6 : vector<1x4xf32> to vector<128x4xf32>
    %48 = arith.addf %46, %47 : vector<128x4xf32>
    %49 = math.tanh %48 : vector<128x4xf32>
    %c0_24 = arith.constant 0 : index
    %c0_25 = arith.constant 0 : index
    %c0_26 = arith.constant 0 : index
    %50 = vector.load %arg6[%c0_24, %c0_25, %c0_26] : memref<1x128x4xf32, #tpu.memory_space<vmem>>, vector<1x128x4xf32>
    %51 = vector.shape_cast %50 : vector<1x128x4xf32> to vector<128x4xf32>
    %52 = vector.shape_cast %49 : vector<128x4xf32> to vector<1x128x4xf32>
    tpu.vector_store %arg6[%c0_24, %c0_25, %c0_26], %52 {strides = array<i32>} : memref<1x128x4xf32, #tpu.memory_space<vmem>>, vector<1x128x4xf32>,
    return
  }
  func.func @transform_0(%arg0: i32) -> (i32, i32, i32) {
    %c0_i32 = arith.constant 0 : i32
    %c0_i32_0 = arith.constant 0 : i32
    %c0_i32_1 = arith.constant 0 : i32
    return %arg0, %c0_i32, %c0_i32_0 : i32, i32, i32
  }
  func.func @transform_1(%arg0: i32) -> (i32, i32) {
    %c0_i32 = arith.constant 0 : i32
    %c0_i32_0 = arith.constant 0 : i32
    %c0_i32_1 = arith.constant 0 : i32
    return %c0_i32, %c0_i32_0 : i32, i32
  }
  func.func @transform_2(%arg0: i32) -> (i32, i32) {
    %c0_i32 = arith.constant 0 : i32
    %c0_i32_0 = arith.constant 0 : i32
    %c0_i32_1 = arith.constant 0 : i32
    return %c0_i32, %c0_i32_0 : i32, i32
  }
  func.func @transform_3(%arg0: i32) -> (i32, i32) {
    %c0_i32 = arith.constant 0 : i32
    %c0_i32_0 = arith.constant 0 : i32
    %c0_i32_1 = arith.constant 0 : i32
    return %c0_i32, %c0_i32_0 : i32, i32
  }
  func.func @transform_4(%arg0: i32) -> (i32, i32) {
    %c0_i32 = arith.constant 0 : i32
    %c0_i32_0 = arith.constant 0 : i32
    %c0_i32_1 = arith.constant 0 : i32
    return %c0_i32, %c0_i32_0 : i32, i32
  }
  func.func @transform_5(%arg0: i32) -> (i32, i32, i32) {
    %c0_i32 = arith.constant 0 : i32
    %c0_i32_0 = arith.constant 0 : i32
    %c0_i32_1 = arith.constant 0 : i32
    return %arg0, %c0_i32, %c0_i32_0 : i32, i32, i32
  }
}

</mosaic_0001>

<llo_original>
// kernel: actor_forward_steps.1
$region0: #{actor_forward_steps.1}
  #allocation0 [shape = 'u32[]', space=smem, size = 0x4, offset = 0x4, fixed_abs, tag = 'smem constant byte address 0x4 - core index']
  #allocation1 [shape = 'u32[144,128]{1,0:T(1,128)}', space=vmem, size = 0x12000, scoped, tag = 'internal scratch']
  %s0 = inlined_call_operand.vmem [shape: f32[4,128,16], index: 0, kind: input, shape index: {}]
  %s1 = inlined_call_operand.vmem [shape: bf16[16,256], index: 1, kind: input, shape index: {}]
  %s2 = inlined_call_operand.vmem [shape: bf16[256,256], index: 2, kind: input, shape index: {}]
  %s3 = inlined_call_operand.vmem [shape: bf16[256,4], index: 3, kind: input, shape index: {}]
  %s4 = inlined_call_operand.vmem [shape: f32[8,256], index: 4, kind: input, shape index: {}]
  %s5 = inlined_call_operand.vmem [shape: f32[4,128,4], index: 5, kind: output, shape index: {}]
  %s6 = sld [smem:[#allocation0]]
  $region53: #{actor_forward_steps.1} parent=0
    _
  %s8 = ssub.s32 1, %s6
  %s9 = scalar_select 0, %s8, %s6
  loop: start=0, step=1, limit=6
  $region2: #{actor_forward_steps.1} parent=0 // loop_pre_header
    _
  $region3: #{actor_forward_steps.1} parent=0 // loop_header
    %s11 = sphi 0, %s15
    %p12 = scmp.ge.s32.totalorder %s11, 6
    %s21 = sphi 0, %s23
    %s24 = sphi 0, %s21
    %s25 = sphi 0, %s24
    %s41 = sphi 0, %s25
    %s45 = sphi 0, %s45
    %s47 = sphi 0, %s45
    %s48 = sphi 0, %s47
    %s62 = sphi 0, %s48
    %s66 = sphi 0, %s66
    %s68 = sphi 0, %s66
    %s69 = sphi 0, %s68
    %s83 = sphi 0, %s69
    %s87 = sphi 0, %s87
    %s89 = sphi 0, %s87
    %s90 = sphi 0, %s89
    %s104 = sphi 0, %s90
    %s108 = sphi 0, %s108
    %s110 = sphi 0, %s108
    %s111 = sphi 0, %s110
    %s125 = sphi 0, %s111
    %s131 = sphi 0, %s133
    %s134 = sphi 0, %s131
    %s135 = sphi 0, %s134
    %s151 = sphi 0, %s135
  $region4: #{actor_forward_steps.1} parent=0 // loop_header_branch
    %14 = sbr.rel (%p12) target = $region8
  $region5: #{actor_forward_steps.1} parent=0 // loop_body
    %s16 = ssub.s32 %s11, 1
    %s17 = ssub.s32 %s11, 2
    %s18 = sadd.s32 %s11, 1
    %s19 = ssub.s32 %s11, %s18
    %p20 = scmp.eq.s32.totalorder %s19, 0
    %s22 = sadd.s32 %s21, 1
    %s23 = scalar_select %p20, %s21, %s22
    %p26 = pneg %p20
    %p27 = scmp.eq.s32.totalorder %s11, 3
    %p28 = por %p26, %p27
    %p29 = scmp.ne.s32.totalorder %s21, %s24
    %p30 = scmp.eq.s32.totalorder %s11, 0
    %p31 = por %p29, %p30
    %p32 = scmp.ne.s32.totalorder %s21, %s24
    %p33 = scmp.eq.s32.totalorder %s16, 3
    %p34 = por %p32, %p33
    %p35 = scmp.ne.s32.totalorder %s24, %s25
    %p36 = scmp.eq.s32.totalorder %s16, 0
    %p37 = por %p35, %p36
    %p38 = scmp.ne.s32.totalorder %s24, %s25
    %p39 = scmp.eq.s32.totalorder %s17, 3
    %p40 = por %p38, %p39
    %p42 = scmp.ne.s32.totalorder %s25, %s41
    %p43 = scmp.eq.s32.totalorder %s17, 0
    %p44 = por %p42, %p43
    %s46 = sadd.s32 %s45, 1
    %p49 = scmp.eq.s32.totalorder %s11, 3
    %p50 = scmp.ne.s32.totalorder %s45, %s47
    %p51 = scmp.eq.s32.totalorder %s11, 0
    %p52 = por %p50, %p51
    %p53 = scmp.ne.s32.totalorder %s45, %s47
    %p54 = scmp.eq.s32.totalorder %s16, 3
    %p55 = por %p53, %p54
    %p56 = scmp.ne.s32.totalorder %s47, %s48
    %p57 = scmp.eq.s32.totalorder %s16, 0
    %p58 = por %p56, %p57
    %p59 = scmp.ne.s32.totalorder %s47, %s48
    %p60 = scmp.eq.s32.totalorder %s17, 3
    %p61 = por %p59, %p60
    %p63 = scmp.ne.s32.totalorder %s48, %s62
    %p64 = scmp.eq.s32.totalorder %s17, 0
    %p65 = por %p63, %p64
    %s67 = sadd.s32 %s66, 1
    %p70 = scmp.eq.s32.totalorder %s11, 3
    %p71 = scmp.ne.s32.totalorder %s66, %s68
    %p72 = scmp.eq.s32.totalorder %s11, 0
    %p73 = por %p71, %p72
    %p74 = scmp.ne.s32.totalorder %s66, %s68
    %p75 = scmp.eq.s32.totalorder %s16, 3
    %p76 = por %p74, %p75
    %p77 = scmp.ne.s32.totalorder %s68, %s69
    %p78 = scmp.eq.s32.totalorder %s16, 0
    %p79 = por %p77, %p78
    %p80 = scmp.ne.s32.totalorder %s68, %s69
    %p81 = scmp.eq.s32.totalorder %s17, 3
    %p82 = por %p80, %p81
    %p84 = scmp.ne.s32.totalorder %s69, %s83
    %p85 = scmp.eq.s32.totalorder %s17, 0
    %p86 = por %p84, %p85
    %s88 = sadd.s32 %s87, 1
    %p91 = scmp.eq.s32.totalorder %s11, 3
    %p92 = scmp.ne.s32.totalorder %s87, %s89
    %p93 = scmp.eq.s32.totalorder %s11, 0
    %p94 = por %p92, %p93
    %p95 = scmp.ne.s32.totalorder %s87, %s89
    %p96 = scmp.eq.s32.totalorder %s16, 3
    %p97 = por %p95, %p96
    %p98 = scmp.ne.s32.totalorder %s89, %s90
    %p99 = scmp.eq.s32.totalorder %s16, 0
    %p100 = por %p98, %p99
    %p101 = scmp.ne.s32.totalorder %s89, %s90
    %p102 = scmp.eq.s32.totalorder %s17, 3
    %p103 = por %p101, %p102
    %p105 = scmp.ne.s32.totalorder %s90, %s104
    %p106 = scmp.eq.s32.totalorder %s17, 0
    %p107 = por %p105, %p106
    %s109 = sadd.s32 %s108, 1
    %p112 = scmp.eq.s32.totalorder %s11, 3
    %p113 = scmp.ne.s32.totalorder %s108, %s110
    %p114 = scmp.eq.s32.totalorder %s11, 0
    %p115 = por %p113, %p114
    %p116 = scmp.ne.s32.totalorder %s108, %s110
    %p117 = scmp.eq.s32.totalorder %s16, 3
    %p118 = por %p116, %p117
    %p119 = scmp.ne.s32.totalorder %s110, %s111
    %p120 = scmp.eq.s32.totalorder %s16, 0
    %p121 = por %p119, %p120
    %p122 = scmp.ne.s32.totalorder %s110, %s111
    %p123 = scmp.eq.s32.totalorder %s17, 3
    %p124 = por %p122, %p123
    %p126 = scmp.ne.s32.totalorder %s111, %s125
    %p127 = scmp.eq.s32.totalorder %s17, 0
    %p128 = por %p126, %p127
    %s129 = ssub.s32 %s11, %s18
    %p130 = scmp.eq.s32.totalorder %s129, 0
    %s132 = sadd.s32 %s131, 1
    %s133 = scalar_select %p130, %s131, %s132
    %p136 = pneg %p130
    %p137 = scmp.eq.s32.totalorder %s11, 3
    %p138 = por %p136, %p137
    %p139 = scmp.ne.s32.totalorder %s131, %s134
    %p140 = scmp.eq.s32.totalorder %s11, 0
    %p141 = por %p139, %p140
    %p142 = scmp.ne.s32.totalorder %s131, %s134
    %p143 = scmp.eq.s32.totalorder %s16, 3
    %p144 = por %p142, %p143
    %p145 = scmp.ne.s32.totalorder %s134, %s135
    %p146 = scmp.eq.s32.totalorder %s16, 0
    %p147 = por %p145, %p146
    %p148 = scmp.ne.s32.totalorder %s134, %s135
    %p149 = scmp.eq.s32.totalorder %s17, 3
    %p150 = por %p148, %p149
    %p152 = scmp.ne.s32.totalorder %s135, %s151
    %p153 = scmp.eq.s32.totalorder %s17, 0
    %p154 = por %p152, %p153
    %p155 = scmp.le.s32.totalorder 1, %s11
    %p156 = scmp.lt.s32.totalorder %s11, 5
    %p157 = pnand %p155, %p156
    %p158 = pneg %p157
    // Predicated region
    $region9: #{actor_forward_steps.1} parent=5 // pred_check
      _
    $region10: #{actor_forward_steps.1} parent=5 // pred_check_branch
      %160 = sbr.rel (%p157) target = $region12
    $region11: #{actor_forward_steps.1} parent=5 // pred_region
      %s161 = ssub.s32 %s11, 1
      // Predicated region
      $region13: #{actor_forward_steps.1} parent=11 // pred_check
        %p162 = pneg %p58
      $region14: #{actor_forward_steps.1} parent=11 // pred_check_branch
        %164 = sbr.rel (%p162) target = $region16
      $region15: #{actor_forward_steps.1} parent=11 // pred_region
        _
      $region16: #{actor_forward_steps.1} parent=11 // pred_fallthru
        _
      // Predicated region
      $region17: #{actor_forward_steps.1} parent=11 // pred_check
        %p165 = pneg %p79
      $region18: #{actor_forward_steps.1} parent=11 // pred_check_branch
        %167 = sbr.rel (%p165) target = $region20
      $region19: #{actor_forward_steps.1} parent=11 // pred_region
        _
      $region20: #{actor_forward_steps.1} parent=11 // pred_fallthru
        _
      // Predicated region
      $region21: #{actor_forward_steps.1} parent=11 // pred_check
        %p168 = pneg %p100
      $region22: #{actor_forward_steps.1} parent=11 // pred_check_branch
        %170 = sbr.rel (%p168) target = $region24
      $region23: #{actor_forward_steps.1} parent=11 // pred_region
        _
      $region24: #{actor_forward_steps.1} parent=11 // pred_fallthru
        _
      // Predicated region
      $region25: #{actor_forward_steps.1} parent=11 // pred_check
        %p171 = pneg %p121
      $region26: #{actor_forward_steps.1} parent=11 // pred_check_branch
        %173 = sbr.rel (%p171) target = $region28
      $region27: #{actor_forward_steps.1} parent=11 // pred_region
        _
      $region28: #{actor_forward_steps.1} parent=11 // pred_fallthru
        _
    $region12: #{actor_forward_steps.1} parent=5 // pred_fallthru
      _
    %p174 = scmp.lt.s32.totalorder %s11, 4
    // Predicated region
    $region29: #{actor_forward_steps.1} parent=5 // pred_check
      %p175 = pneg %p174
    $region30: #{actor_forward_steps.1} parent=5 // pred_check_branch
      %177 = sbr.rel (%p175) target = $region32
    $region31: #{actor_forward_steps.1} parent=5 // pred_region
      // Predicated region
      $region33: #{actor_forward_steps.1} parent=31 // pred_check
        %p178 = pneg %p31
      $region34: #{actor_forward_steps.1} parent=31 // pred_check_branch
        %180 = sbr.rel (%p178) target = $region36
      $region35: #{actor_forward_steps.1} parent=31 // pred_region
        %p181 = scmp.lt.s32.totalorder %s11, 3
        %s182 = scalar_select %p181, %s11, 3
        %s183 = smul.addr %s182, 16
        %s184 = smul.addr %s183, 8
        %s185 = scalar_lea.vmem %s0, %s184
      $region36: #{actor_forward_steps.1} parent=31 // pred_fallthru
        _
    $region32: #{actor_forward_steps.1} parent=5 // pred_fallthru
      _
    %p186 = scmp.le.s32.totalorder 1, %s11
    %p187 = scmp.lt.s32.totalorder %s11, 5
    %p188 = pnand %p186, %p187
    %p189 = pneg %p188
    // Predicated region
    $region37: #{actor_forward_steps.1} parent=5 // pred_check
      _
    $region38: #{actor_forward_steps.1} parent=5 // pred_check_branch
      %191 = sbr.rel (%p188) target = $region40
    $region39: #{actor_forward_steps.1} parent=5 // pred_region
      %s192 = ssub.s32 %s11, 1
      %p193 = scmp.lt.s32.totalorder %s16, 3
      %s194 = scalar_select %p193, %s16, 3
      %s195 = smul.addr %s194, 16
      %s196 = smul.addr %s195, 8
      %s197 = scalar_lea.vmem %s0, %s196
      %p198 = pneg %p37
      %p199 = pneg %p34
      %p200 = pneg %p58
      %p201 = pneg %p55
      %p202 = pneg %p79
      %p203 = pneg %p76
      %p204 = pneg %p100
      %p205 = pneg %p97
      %p206 = pneg %p121
      %p207 = pneg %p118
      %p208 = pneg %p147
      %p209 = pneg %p144
      %p210 = scmp.lt.s32.totalorder %s16, 3
      %s211 = scalar_select %p210, %s16, 3
      %s212 = smul.addr %s211, 16
      %s213 = smul.addr %s212, 8
      %s214 = scalar_lea.vmem %s5, %s213
      %p215 = scmp.lt.s32.totalorder %s16, 3
      %s216 = scalar_select %p215, %s16, 3
      %s217 = smul.addr %s216, 16
      %s218 = smul.addr %s217, 8
      %s219 = scalar_lea.vmem %s0, %s218
      %p220 = scmp.lt.s32.totalorder %s16, 3
      %s221 = scalar_select %p220, %s16, 3
      %s222 = smul.addr %s221, 16
      %s223 = smul.addr %s222, 8
      %s224 = scalar_lea.vmem %s5, %s223
      %v226 = vld [vmem:[%s219] sm:$0xff]
      %v227 = vld [vmem:[%s219 + $0x8] sm:$0xff]
      %v228 = vld [vmem:[%s219 + $0x10] sm:$0xff]
      %v229 = vld [vmem:[%s219 + $0x18] sm:$0xff]
      %v230 = vld [vmem:[%s219 + $0x20] sm:$0xff]
      %v231 = vld [vmem:[%s219 + $0x28] sm:$0xff]
      %v232 = vld [vmem:[%s219 + $0x30] sm:$0xff]
      %v233 = vld [vmem:[%s219 + $0x38] sm:$0xff]
      %v234 = vld [vmem:[%s219 + $0x40] sm:$0xff]
      %v235 = vld [vmem:[%s219 + $0x48] sm:$0xff]
      %v236 = vld [vmem:[%s219 + $0x50] sm:$0xff]
      %v237 = vld [vmem:[%s219 + $0x58] sm:$0xff]
      %v238 = vld [vmem:[%s219 + $0x60] sm:$0xff]
      %v239 = vld [vmem:[%s219 + $0x68] sm:$0xff]
      %v240 = vld [vmem:[%s219 + $0x70] sm:$0xff]
      %v241 = vld [vmem:[%s219 + $0x78] sm:$0xff]
      %v242 = vld [vmem:[%s4] ss:$8 sm:$0x3]
      %s243 = scalar_lea.vmem %s4, 1
      %v244 = vld [vmem:[%s243] ss:$8 sm:$0x3]
      %s245 = scalar_lea.vmem %s4, 2
      %v246 = vld [vmem:[%s245] ss:$8 sm:$0x3]
      %s247 = scalar_lea.vmem %s4, 3
      %v248 = vld [vmem:[%s247] ss:$8 sm:$0x3]
      %v249 = vld [vmem:[%s4 + $0x4] ss:$0 sm:$0xff]
      %v250 = vpack.c.bf16 %v227, %v226
      %v251 = vpack.c.bf16 %v229, %v228
      %v252 = vpack.c.bf16 %v231, %v230
      %v253 = vpack.c.bf16 %v233, %v232
      %v254 = vpack.c.bf16 %v235, %v234
      %v255 = vpack.c.bf16 %v237, %v236
      %v256 = vpack.c.bf16 %v239, %v238
      %v257 = vpack.c.bf16 %v241, %v240
      %v258 = vld [vmem:[%s1] sm:$0xff]
      %v259 = vld [vmem:[%s1 + $0x8] sm:$0xff]
      %v261 = vlaneseq
      %v262 = vshrl.u32 %v261, 7
      %v263 = vsub.s32 0, %v262
      %v264 = vrot.slane %v242, %v263
      %v265 = vlaneseq
      %v266 = vshrl.u32 %v265, 7
      %v267 = vsub.s32 1, %v266
      %v268 = vrot.slane %v242, %v267
      %v273 = vunpack.c.l.b16 %v258
      %v274 = vunpack.c.h.b16 %v258
      %v275 = vunpack.c.l.b16 %v259
      %v276 = vunpack.c.h.b16 %v259
      %v277 = vpack.c.b16 %v275, %v273
      %v278 = vpack.c.b16 %v276, %v274
      %vm281 = vcmask 130048
      %v283 = vsel %vm281, %v250, 0
      %v286 = vsel %vm281, %v251, 0
      %v289 = vsel %vm281, %v252, 0
      %v292 = vsel %vm281, %v253, 0
      %v295 = vsel %vm281, %v254, 0
      %v298 = vsel %vm281, %v255, 0
      %v301 = vsel %vm281, %v256, 0
      %v304 = vsel %vm281, %v257, 0
      %306 = vmatprep.subr.bf16.mxu0 %v278
      %307 = vmatpush1.bf16.msra.mxu0 %v277
      %308 = vmatprep.subr.bf16.mxu0 0
      %309 = vmatpush1.bf16.msra.mxu0 0
      %310 = vmatprep.subr.bf16.mxu0 0
      %311 = vmatpush1.bf16.msra.mxu0 0
      %312 = vmatprep.subr.bf16.mxu0 0
      %313 = vmatpush1.bf16.msra.mxu0 0
      %314 = vmatprep.subr.bf16.mxu0 0
      %315 = vmatpush1.bf16.msra.mxu0 0
      %316 = vmatprep.subr.bf16.mxu0 0
      %317 = vmatpush1.bf16.msra.mxu0 0
      %318 = vmatprep.subr.bf16.mxu0 0
      %319 = vmatpush1.bf16.msra.mxu0 0
      %320 = vmatprep.subr.bf16.mxu0 0
      %321 = vmatpush1.bf16.msra.mxu0 0
      %322 = vmatprep.subr.bf16.mxu0 0
      %323 = vmatpush1.bf16.msra.mxu0 0
      %324 = vmatprep.subr.bf16.mxu0 0
      %325 = vmatpush1.bf16.msra.mxu0 0
      %326 = vmatprep.subr.bf16.mxu0 0
      %327 = vmatpush1.bf16.msra.mxu0 0
      %328 = vmatprep.subr.bf16.mxu0 0
      %329 = vmatpush1.bf16.msra.mxu0 0
      %330 = vmatprep.subr.bf16.mxu0 0
      %331 = vmatpush1.bf16.msra.mxu0 0
      %332 = vmatprep.subr.bf16.mxu0 0
      %333 = vmatpush1.bf16.msra.mxu0 0
      %334 = vmatprep.subr.bf16.mxu0 0
      %335 = vmatpush1.bf16.msra.mxu0 0
      %336 = vmatprep.subr.bf16.mxu0 0
      %337 = vmatpush1.bf16.msra.mxu0 0
      %338 = vmatprep.mubr.bf16.mxu0 0
      %339 = vmatmul.mubr.bf16.gmra.mrb[0].mxu0 %v283
      %v340 = vpop.f32.mrb[0].mxu0
      %v341 = vadd.f32 %v264, %v340
      %v342 = vpop.f32.mrb[0].mxu0
      %v343 = vadd.f32 %v268, %v342
      %v344 = vpop.f32.mrb[0].mxu0
      %v345 = vadd.f32 %v264, %v344
      %v346 = vpop.f32.mrb[0].mxu0
      %v347 = vadd.f32 %v268, %v346
      %348 = vmatprep.mubr.bf16.mxu0 0
      %349 = vmatmul.mubr.bf16.gmra.mrb[0].mxu0 %v286
      %v350 = vpop.f32.mrb[0].mxu0
      %v351 = vadd.f32 %v264, %v350
      %v352 = vpop.f32.mrb[0].mxu0
      %v353 = vadd.f32 %v268, %v352
      %v354 = vpop.f32.mrb[0].mxu0
      %v355 = vadd.f32 %v264, %v354
      %v356 = vpop.f32.mrb[0].mxu0
      %v357 = vadd.f32 %v268, %v356
      %358 = vmatprep.mubr.bf16.mxu0 0
      %359 = vmatmul.mubr.bf16.gmra.mrb[0].mxu0 %v289
      %v360 = vpop.f32.mrb[0].mxu0
      %v361 = vadd.f32 %v264, %v360
      %v362 = vpop.f32.mrb[0].mxu0
      %v363 = vadd.f32 %v268, %v362
      %v364 = vpop.f32.mrb[0].mxu0
      %v365 = vadd.f32 %v264, %v364
      %v366 = vpop.f32.mrb[0].mxu0
      %v367 = vadd.f32 %v268, %v366
      %368 = vmatprep.mubr.bf16.mxu0 0
      %369 = vmatmul.mubr.bf16.gmra.mrb[0].mxu0 %v292
      %v370 = vpop.f32.mrb[0].mxu0
      %v371 = vadd.f32 %v264, %v370
      %v372 = vpop.f32.mrb[0].mxu0
      %v373 = vadd.f32 %v268, %v372
      %v374 = vpop.f32.mrb[0].mxu0
      %v375 = vadd.f32 %v264, %v374
      %v376 = vpop.f32.mrb[0].mxu0
      %v377 = vadd.f32 %v268, %v376
      %378 = vmatprep.mubr.bf16.mxu0 0
      %379 = vmatmul.mubr.bf16.gmra.mrb[0].mxu0 %v295
      %v380 = vpop.f32.mrb[0].mxu0
      %v381 = vadd.f32 %v264, %v380
      %v382 = vpop.f32.mrb[0].mxu0
      %v383 = vadd.f32 %v268, %v382
      %v384 = vpop.f32.mrb[0].mxu0
      %v385 = vadd.f32 %v264, %v384
      %v386 = vpop.f32.mrb[0].mxu0
      %v387 = vadd.f32 %v268, %v386
      %388 = vmatprep.mubr.bf16.mxu0 0
      %389 = vmatmul.mubr.bf16.gmra.mrb[0].mxu0 %v298
      %v390 = vpop.f32.mrb[0].mxu0
      %v391 = vadd.f32 %v264, %v390
      %v392 = vpop.f32.mrb[0].mxu0
      %v393 = vadd.f32 %v268, %v392
      %v394 = vpop.f32.mrb[0].mxu0
      %v395 = vadd.f32 %v264, %v394
      %v396 = vpop.f32.mrb[0].mxu0
      %v397 = vadd.f32 %v268, %v396
      %398 = vmatprep.mubr.bf16.mxu0 0
      %399 = vmatmul.mubr.bf16.gmra.mrb[0].mxu0 %v301
      %v400 = vpop.f32.mrb[0].mxu0
      %v401 = vadd.f32 %v264, %v400
      %v402 = vpop.f32.mrb[0].mxu0
      %v403 = vadd.f32 %v268, %v402
      %v404 = vpop.f32.mrb[0].mxu0
      %v405 = vadd.f32 %v264, %v404
      %v406 = vpop.f32.mrb[0].mxu0
      %v407 = vadd.f32 %v268, %v406
      %408 = vmatprep.mubr.bf16.mxu0 0
      %409 = vmatmul.mubr.bf16.gmra.mrb[0].mxu0 %v304
      %v410 = vpop.f32.mrb[0].mxu0
      %v411 = vadd.f32 %v264, %v410
      %v412 = vpop.f32.mrb[0].mxu0
      %v413 = vadd.f32 %v268, %v412
      %v414 = vpop.f32.mrb[0].mxu0
      %v415 = vadd.f32 %v264, %v414
      %v416 = vpop.f32.mrb[0].mxu0
      %v417 = vadd.f32 %v268, %v416
      %418 = vdwg.mxu0
      %v419 = vmax.f32 %v341, 0.0
      %v420 = vmax.f32 %v343, 0.0
      %v421 = vmax.f32 %v345, 0.0
      %v422 = vmax.f32 %v347, 0.0
      %v423 = vmax.f32 %v351, 0.0
      %v424 = vmax.f32 %v353, 0.0
      %v425 = vmax.f32 %v355, 0.0
      %v426 = vmax.f32 %v357, 0.0
      %v427 = vmax.f32 %v361, 0.0
      %v428 = vmax.f32 %v363, 0.0
      %v429 = vmax.f32 %v365, 0.0
      %v430 = vmax.f32 %v367, 0.0
      %v431 = vmax.f32 %v371, 0.0
      %v432 = vmax.f32 %v373, 0.0
      %v433 = vmax.f32 %v375, 0.0
      %v434 = vmax.f32 %v377, 0.0
      %v435 = vmax.f32 %v381, 0.0
      %v436 = vmax.f32 %v383, 0.0
      %v437 = vmax.f32 %v385, 0.0
      %v438 = vmax.f32 %v387, 0.0
      %v439 = vmax.f32 %v391, 0.0
      %v440 = vmax.f32 %v393, 0.0
      %v441 = vmax.f32 %v395, 0.0
      %v442 = vmax.f32 %v397, 0.0
      %v443 = vmax.f32 %v401, 0.0
      %v444 = vmax.f32 %v403, 0.0
      %v445 = vmax.f32 %v405, 0.0
      %v446 = vmax.f32 %v407, 0.0
      %v447 = vmax.f32 %v411, 0.0
      %v448 = vmax.f32 %v413, 0.0
      %v449 = vmax.f32 %v415, 0.0
      %v450 = vmax.f32 %v417, 0.0
      %v451 = vadd.f32 %v419, %v421
      %v452 = vadd.f32 %v451, %v423
      %v453 = vadd.f32 %v452, %v425
      %v454 = vadd.f32 %v453, %v427
      %v455 = vadd.f32 %v454, %v429
      %v456 = vadd.f32 %v455, %v431
      %v457 = vadd.f32 %v456, %v433
      %v458 = vadd.f32 %v457, %v435
      %v459 = vadd.f32 %v458, %v437
      %v460 = vadd.f32 %v459, %v439
      %v461 = vadd.f32 %v460, %v441
      %v462 = vadd.f32 %v461, %v443
      %v463 = vadd.f32 %v462, %v445
      %v464 = vadd.f32 %v463, %v447
      %v465 = vadd.f32 %v464, %v449
      %v466 = vrot.slane %v465, 4
      %v467 = vadd.f32 %v465, %v466
      %v468 = vrot.slane %v467, 2
      %v469 = vadd.f32 %v467, %v468
      %v470 = vrot.slane %v469, 1
      %v471 = vadd.f32 %v469, %v470
      %v472 = vadd.f32 %v420, %v422
      %v473 = vadd.f32 %v472, %v424
      %v474 = vadd.f32 %v473, %v426
      %v475 = vadd.f32 %v474, %v428
      %v476 = vadd.f32 %v475, %v430
      %v477 = vadd.f32 %v476, %v432
      %v478 = vadd.f32 %v477, %v434
      %v479 = vadd.f32 %v478, %v436
      %v480 = vadd.f32 %v479, %v438
      %v481 = vadd.f32 %v480, %v440
      %v482 = vadd.f32 %v481, %v442
      %v483 = vadd.f32 %v482, %v444
      %v484 = vadd.f32 %v483, %v446
      %v485 = vadd.f32 %v484, %v448
      %v486 = vadd.f32 %v485, %v450
      %v487 = vrot.slane %v486, 4
      %v488 = vadd.f32 %v486, %v487
      %v489 = vrot.slane %v488, 2
      %v490 = vadd.f32 %v488, %v489
      %v491 = vrot.slane %v490, 1
      %v492 = vadd.f32 %v490, %v491
      %v493 = vmul.f32 %v471, 0.0078125
      %v494 = vmul.f32 %v492, 0.0078125
      %v495 = vmul.f32 %v419, %v419
      %v496 = vmul.f32 %v420, %v420
      %v497 = vmul.f32 %v421, %v421
      %v498 = vmul.f32 %v422, %v422
      %v499 = vmul.f32 %v423, %v423
      %v500 = vmul.f32 %v424, %v424
      %v501 = vmul.f32 %v425, %v425
      %v502 = vmul.f32 %v426, %v426
      %v503 = vmul.f32 %v427, %v427
      %v504 = vmul.f32 %v428, %v428
      %v505 = vmul.f32 %v429, %v429
      %v506 = vmul.f32 %v430, %v430
      %v507 = vmul.f32 %v431, %v431
      %v508 = vmul.f32 %v432, %v432
      %v509 = vmul.f32 %v433, %v433
      %v510 = vmul.f32 %v434, %v434
      %v511 = vmul.f32 %v435, %v435
      %v512 = vmul.f32 %v436, %v436
      %v513 = vmul.f32 %v437, %v437
      %v514 = vmul.f32 %v438, %v438
      %v515 = vmul.f32 %v439, %v439
      %v516 = vmul.f32 %v440, %v440
      %v517 = vmul.f32 %v441, %v441
      %v518 = vmul.f32 %v442, %v442
      %v519 = vmul.f32 %v443, %v443
      %v520 = vmul.f32 %v444, %v444
      %v521 = vmul.f32 %v445, %v445
      %v522 = vmul.f32 %v446, %v446
      %v523 = vmul.f32 %v447, %v447
      %v524 = vmul.f32 %v448, %v448
      %v525 = vmul.f32 %v449, %v449
      %v526 = vmul.f32 %v450, %v450
      %v527 = vadd.f32 %v495, %v497
      %v528 = vadd.f32 %v527, %v499
      %v529 = vadd.f32 %v528, %v501
      %v530 = vadd.f32 %v529, %v503
      %v531 = vadd.f32 %v530, %v505
      %v532 = vadd.f32 %v531, %v507
      %v533 = vadd.f32 %v532, %v509
      %v534 = vadd.f32 %v533, %v511
      %v535 = vadd.f32 %v534, %v513
      %v536 = vadd.f32 %v535, %v515
      %v537 = vadd.f32 %v536, %v517
      %v538 = vadd.f32 %v537, %v519
      %v539 = vadd.f32 %v538, %v521
      %v540 = vadd.f32 %v539, %v523
      %v541 = vadd.f32 %v540, %v525
      %v542 = vrot.slane %v541, 4
      %v543 = vadd.f32 %v541, %v542
      %v544 = vrot.slane %v543, 2
      %v545 = vadd.f32 %v543, %v544
      %v546 = vrot.slane %v545, 1
      %v547 = vadd.f32 %v545, %v546
      %v548 = vadd.f32 %v496, %v498
      %v549 = vadd.f32 %v548, %v500
      %v550 = vadd.f32 %v549, %v502
      %v551 = vadd.f32 %v550, %v504
      %v552 = vadd.f32 %v551, %v506
      %v553 = vadd.f32 %v552, %v508
      %v554 = vadd.f32 %v553, %v510
      %v555 = vadd.f32 %v554, %v512
      %v556 = vadd.f32 %v555, %v514
      %v557 = vadd.f32 %v556, %v516
      %v558 = vadd.f32 %v557, %v518
      %v559 = vadd.f32 %v558, %v520
      %v560 = vadd.f32 %v559, %v522
      %v561 = vadd.f32 %v560, %v524
      %v562 = vadd.f32 %v561, %v526
      %v563 = vrot.slane %v562, 4
      %v564 = vadd.f32 %v562, %v563
      %v565 = vrot.slane %v564, 2
      %v566 = vadd.f32 %v564, %v565
      %v567 = vrot.slane %v566, 1
      %v568 = vadd.f32 %v566, %v567
      %v569 = vmul.f32 %v547, 0.0078125
      %v570 = vmul.f32 %v568, 0.0078125
      %v571 = vmul.f32 %v493, %v493
      %v572 = vmul.f32 %v494, %v494
      %v573 = vsub.f32 %v569, %v571
      %v574 = vsub.f32 %v570, %v572
      %v575 = vmax.f32 %v573, 0.0
      %v576 = vmax.f32 %v574, 0.0
      %v577 = vadd.f32 %v575, 1e-05
      %v578 = vadd.f32 %v576, 1e-05
      %v579 = vrsqrt.pop %v577
      %v580 = vrsqrt.pop %v578
      %v583 = vcombine.low %v579, %v580
      %v585 = vunpack.c.l.s4 1966171168
      %v586 = vunpack.c.0.s8 %v585
      %v587 = vlaneseq
      %v588 = vshrl.u32 %v587, 7
      %v589 = vsub.s32 %v586, %v588
      %v590 = vrot.slane %v583, %v589
      %v592 = vunpack.c.l.s4 1966171168
      %v593 = vunpack.c.0.s8 %v592
      %v594 = vlaneseq
      %v595 = vshrl.u32 %v594, 7
      %v596 = vsub.s32 %v593, %v595
      %v597 = vrot.slane %v590, %v596
      %v599 = vmul.f32 %v244, %v597
      %v601 = vlaneseq
      %v602 = vshrl.u32 %v601, 7
      %v603 = vsub.s32 0, %v602
      %v604 = vrot.slane %v599, %v603
      %v605 = vlaneseq
      %v606 = vshrl.u32 %v605, 7
      %v607 = vsub.s32 1, %v606
      %v608 = vrot.slane %v599, %v607
      %v611 = vmul.f32 %v493, %v604
      %v612 = vmul.f32 %v494, %v608
      %v615 = vcombine.low %v611, %v612
      %v617 = vunpack.c.l.s4 1966171168
      %v618 = vunpack.c.0.s8 %v617
      %v619 = vlaneseq
      %v620 = vshrl.u32 %v619, 7
      %v621 = vsub.s32 %v618, %v620
      %v622 = vrot.slane %v615, %v621
      %v624 = vunpack.c.l.s4 1966171168
      %v625 = vunpack.c.0.s8 %v624
      %v626 = vlaneseq
      %v627 = vshrl.u32 %v626, 7
      %v628 = vsub.s32 %v625, %v627
      %v629 = vrot.slane %v622, %v628
      %v631 = vsub.f32 %v246, %v629
      %v632 = vmul.f32 %v419, %v604
      %v633 = vmul.f32 %v420, %v608
      %v634 = vmul.f32 %v421, %v604
      %v635 = vmul.f32 %v422, %v608
      %v636 = vmul.f32 %v423, %v604
      %v637 = vmul.f32 %v424, %v608
      %v638 = vmul.f32 %v425, %v604
      %v639 = vmul.f32 %v426, %v608
      %v640 = vmul.f32 %v427, %v604
      %v641 = vmul.f32 %v428, %v608
      %v642 = vmul.f32 %v429, %v604
      %v643 = vmul.f32 %v430, %v608
      %v644 = vmul.f32 %v431, %v604
      %v645 = vmul.f32 %v432, %v608
      %v646 = vmul.f32 %v433, %v604
      %v647 = vmul.f32 %v434, %v608
      %v648 = vmul.f32 %v435, %v604
      %v649 = vmul.f32 %v436, %v608
      %v650 = vmul.f32 %v437, %v604
      %v651 = vmul.f32 %v438, %v608
      %v652 = vmul.f32 %v439, %v604
      %v653 = vmul.f32 %v440, %v608
      %v654 = vmul.f32 %v441, %v604
      %v655 = vmul.f32 %v442, %v608
      %v656 = vmul.f32 %v443, %v604
      %v657 = vmul.f32 %v444, %v608
      %v658 = vmul.f32 %v445, %v604
      %v659 = vmul.f32 %v446, %v608
      %v660 = vmul.f32 %v447, %v604
      %v661 = vmul.f32 %v448, %v608
      %v662 = vmul.f32 %v449, %v604
      %v663 = vmul.f32 %v450, %v608
      %v665 = vlaneseq
      %v666 = vshrl.u32 %v665, 7
      %v667 = vsub.s32 0, %v666
      %v668 = vrot.slane %v631, %v667
      %v669 = vlaneseq
      %v670 = vshrl.u32 %v669, 7
      %v671 = vsub.s32 1, %v670
      %v672 = vrot.slane %v631, %v671
      %v675 = vadd.f32 %v632, %v668
      %v676 = vadd.f32 %v633, %v672
      %v677 = vadd.f32 %v634, %v668
      %v678 = vadd.f32 %v635, %v672
      %v679 = vadd.f32 %v636, %v668
      %v680 = vadd.f32 %v637, %v672
      %v681 = vadd.f32 %v638, %v668
      %v682 = vadd.f32 %v639, %v672
      %v683 = vadd.f32 %v640, %v668
      %v684 = vadd.f32 %v641, %v672
      %v685 = vadd.f32 %v642, %v668
      %v686 = vadd.f32 %v643, %v672
      %v687 = vadd.f32 %v644, %v668
      %v688 = vadd.f32 %v645, %v672
      %v689 = vadd.f32 %v646, %v668
      %v690 = vadd.f32 %v647, %v672
      %v691 = vadd.f32 %v648, %v668
      %v692 = vadd.f32 %v649, %v672
      %v693 = vadd.f32 %v650, %v668
      %v694 = vadd.f32 %v651, %v672
      %v695 = vadd.f32 %v652, %v668
      %v696 = vadd.f32 %v653, %v672
      %v697 = vadd.f32 %v654, %v668
      %v698 = vadd.f32 %v655, %v672
      %v699 = vadd.f32 %v656, %v668
      %v700 = vadd.f32 %v657, %v672
      %v701 = vadd.f32 %v658, %v668
      %v702 = vadd.f32 %v659, %v672
      %v703 = vadd.f32 %v660, %v668
      %v704 = vadd.f32 %v661, %v672
      %v705 = vadd.f32 %v662, %v668
      %v706 = vadd.f32 %v663, %v672
      %v707 = vpack.c.bf16 %v677, %v675
      %v708 = vpack.c.bf16 %v678, %v676
      %v709 = vpack.c.bf16 %v681, %v679
      %v710 = vpack.c.bf16 %v682, %v680
      %v711 = vpack.c.bf16 %v685, %v683
      %v712 = vpack.c.bf16 %v686, %v684
      %v713 = vpack.c.bf16 %v689, %v687
      %v714 = vpack.c.bf16 %v690, %v688
      %v715 = vpack.c.bf16 %v693, %v691
      %v716 = vpack.c.bf16 %v694, %v692
      %v717 = vpack.c.bf16 %v697, %v695
      %v718 = vpack.c.bf16 %v698, %v696
      %v719 = vpack.c.bf16 %v701, %v699
      %v720 = vpack.c.bf16 %v702, %v700
      %v721 = vpack.c.bf16 %v705, %v703
      %v722 = vpack.c.bf16 %v706, %v704
      %v723 = vld [vmem:[%s2] sm:$0xff]
      %v724 = vld [vmem:[%s2 + $0x8] sm:$0xff]
      %v725 = vld [vmem:[%s2 + $0x10] sm:$0xff]
      %v726 = vld [vmem:[%s2 + $0x18] sm:$0xff]
      %v727 = vld [vmem:[%s2 + $0x20] sm:$0xff]
      %v728 = vld [vmem:[%s2 + $0x28] sm:$0xff]
      %v729 = vld [vmem:[%s2 + $0x30] sm:$0xff]
      %v730 = vld [vmem:[%s2 + $0x38] sm:$0xff]
      %v731 = vld [vmem:[%s2 + $0x40] sm:$0xff]
      %v732 = vld [vmem:[%s2 + $0x48] sm:$0xff]
      %v733 = vld [vmem:[%s2 + $0x50] sm:$0xff]
      %v734 = vld [vmem:[%s2 + $0x58] sm:$0xff]
      %v735 = vld [vmem:[%s2 + $0x60] sm:$0xff]
      %v736 = vld [vmem:[%s2 + $0x68] sm:$0xff]
      %v737 = vld [vmem:[%s2 + $0x70] sm:$0xff]
      %v738 = vld [vmem:[%s2 + $0x78] sm:$0xff]
      %v739 = vld [vmem:[%s2 + $0x80] sm:$0xff]
      %v740 = vld [vmem:[%s2 + $0x88] sm:$0xff]
      %v741 = vld [vmem:[%s2 + $0x90] sm:$0xff]
      %v742 = vld [vmem:[%s2 + $0x98] sm:$0xff]
      %v743 = vld [vmem:[%s2 + $0xa0] sm:$0xff]
      %v744 = vld [vmem:[%s2 + $0xa8] sm:$0xff]
      %v745 = vld [vmem:[%s2 + $0xb0] sm:$0xff]
      %v746 = vld [vmem:[%s2 + $0xb8] sm:$0xff]
      %v747 = vld [vmem:[%s2 + $0xc0] sm:$0xff]
      %v748 = vld [vmem:[%s2 + $0xc8] sm:$0xff]
      %v749 = vld [vmem:[%s2 + $0xd0] sm:$0xff]
      %v750 = vld [vmem:[%s2 + $0xd8] sm:$0xff]
      %v751 = vld [vmem:[%s2 + $0xe0] sm:$0xff]
      %v752 = vld [vmem:[%s2 + $0xe8] sm:$0xff]
      %v753 = vld [vmem:[%s2 + $0xf0] sm:$0xff]
      %v754 = vld [vmem:[%s2 + $0xf8] sm:$0xff]
      %v756 = vlaneseq
      %v757 = vshrl.u32 %v756, 7
      %v758 = vsub.s32 0, %v757
      %v759 = vrot.slane %v248, %v758
      %v760 = vlaneseq
      %v761 = vshrl.u32 %v760, 7
      %v762 = vsub.s32 1, %v761
      %v763 = vrot.slane %v248, %v762
      %v798 = vunpack.c.l.b16 %v723
      %v799 = vunpack.c.h.b16 %v723
      %v800 = vunpack.c.l.b16 %v724
      %v801 = vunpack.c.h.b16 %v724
      %v802 = vunpack.c.l.b16 %v725
      %v803 = vunpack.c.h.b16 %v725
      %v804 = vunpack.c.l.b16 %v726
      %v805 = vunpack.c.h.b16 %v726
      %v806 = vunpack.c.l.b16 %v727
      %v807 = vunpack.c.h.b16 %v727
      %v808 = vunpack.c.l.b16 %v728
      %v809 = vunpack.c.h.b16 %v728
      %v810 = vunpack.c.l.b16 %v729
      %v811 = vunpack.c.h.b16 %v729
      %v812 = vunpack.c.l.b16 %v730
      %v813 = vunpack.c.h.b16 %v730
      %v814 = vunpack.c.l.b16 %v731
      %v815 = vunpack.c.h.b16 %v731
      %v816 = vunpack.c.l.b16 %v732
      %v817 = vunpack.c.h.b16 %v732
      %v818 = vunpack.c.l.b16 %v733
      %v819 = vunpack.c.h.b16 %v733
      %v820 = vunpack.c.l.b16 %v734
      %v821 = vunpack.c.h.b16 %v734
      %v822 = vunpack.c.l.b16 %v735
      %v823 = vunpack.c.h.b16 %v735
      %v824 = vunpack.c.l.b16 %v736
      %v825 = vunpack.c.h.b16 %v736
      %v826 = vunpack.c.l.b16 %v737
      %v827 = vunpack.c.h.b16 %v737
      %v828 = vunpack.c.l.b16 %v738
      %v829 = vunpack.c.h.b16 %v738
      %v830 = vunpack.c.l.b16 %v739
      %v831 = vunpack.c.h.b16 %v739
      %v832 = vunpack.c.l.b16 %v740
      %v833 = vunpack.c.h.b16 %v740
      %v834 = vunpack.c.l.b16 %v741
      %v835 = vunpack.c.h.b16 %v741
      %v836 = vunpack.c.l.b16 %v742
      %v837 = vunpack.c.h.b16 %v742
      %v838 = vunpack.c.l.b16 %v743
      %v839 = vunpack.c.h.b16 %v743
      %v840 = vunpack.c.l.b16 %v744
      %v841 = vunpack.c.h.b16 %v744
      %v842 = vunpack.c.l.b16 %v745
      %v843 = vunpack.c.h.b16 %v745
      %v844 = vunpack.c.l.b16 %v746
      %v845 = vunpack.c.h.b16 %v746
      %v846 = vunpack.c.l.b16 %v747
      %v847 = vunpack.c.h.b16 %v747
      %v848 = vunpack.c.l.b16 %v748
      %v849 = vunpack.c.h.b16 %v748
      %v850 = vunpack.c.l.b16 %v749
      %v851 = vunpack.c.h.b16 %v749
      %v852 = vunpack.c.l.b16 %v750
      %v853 = vunpack.c.h.b16 %v750
      %v854 = vunpack.c.l.b16 %v751
      %v855 = vunpack.c.h.b16 %v751
      %v856 = vunpack.c.l.b16 %v752
      %v857 = vunpack.c.h.b16 %v752
      %v858 = vunpack.c.l.b16 %v753
      %v859 = vunpack.c.h.b16 %v753
      %v860 = vunpack.c.l.b16 %v754
      %v861 = vunpack.c.h.b16 %v754
      %v862 = vpack.c.b16 %v800, %v798
      %v863 = vpack.c.b16 %v801, %v799
      %v864 = vpack.c.b16 %v804, %v802
      %v865 = vpack.c.b16 %v805, %v803
      %v866 = vpack.c.b16 %v808, %v806
      %v867 = vpack.c.b16 %v809, %v807
      %v868 = vpack.c.b16 %v812, %v810
      %v869 = vpack.c.b16 %v813, %v811
      %v870 = vpack.c.b16 %v816, %v814
      %v871 = vpack.c.b16 %v817, %v815
      %v872 = vpack.c.b16 %v820, %v818
      %v873 = vpack.c.b16 %v821, %v819
      %v874 = vpack.c.b16 %v824, %v822
      %v875 = vpack.c.b16 %v825, %v823
      %v876 = vpack.c.b16 %v828, %v826
      %v877 = vpack.c.b16 %v829, %v827
      %v878 = vpack.c.b16 %v832, %v830
      %v879 = vpack.c.b16 %v833, %v831
      %v880 = vpack.c.b16 %v836, %v834
      %v881 = vpack.c.b16 %v837, %v835
      %v882 = vpack.c.b16 %v840, %v838
      %v883 = vpack.c.b16 %v841, %v839
      %v884 = vpack.c.b16 %v844, %v842
      %v885 = vpack.c.b16 %v845, %v843
      %v886 = vpack.c.b16 %v848, %v846
      %v887 = vpack.c.b16 %v849, %v847
      %v888 = vpack.c.b16 %v852, %v850
      %v889 = vpack.c.b16 %v853, %v851
      %v890 = vpack.c.b16 %v856, %v854
      %v891 = vpack.c.b16 %v857, %v855
      %v892 = vpack.c.b16 %v860, %v858
      %v893 = vpack.c.b16 %v861, %v859
      %926 = vmatprep.subr.bf16.mxu0 %v863
      %927 = vmatpush1.bf16.msra.mxu0 %v862
      %928 = vmatprep.subr.bf16.mxu0 %v865
      %929 = vmatpush1.bf16.msra.mxu0 %v864
      %930 = vmatprep.subr.bf16.mxu0 %v867
      %931 = vmatpush1.bf16.msra.mxu0 %v866
      %932 = vmatprep.subr.bf16.mxu0 %v869
      %933 = vmatpush1.bf16.msra.mxu0 %v868
      %934 = vmatprep.subr.bf16.mxu0 %v871
      %935 = vmatpush1.bf16.msra.mxu0 %v870
      %936 = vmatprep.subr.bf16.mxu0 %v873
      %937 = vmatpush1.bf16.msra.mxu0 %v872
      %938 = vmatprep.subr.bf16.mxu0 %v875
      %939 = vmatpush1.bf16.msra.mxu0 %v874
      %940 = vmatprep.subr.bf16.mxu0 %v877
      %941 = vmatpush1.bf16.msra.mxu0 %v876
      %942 = vmatprep.subr.bf16.mxu0 %v879
      %943 = vmatpush1.bf16.msra.mxu0 %v878
      %944 = vmatprep.subr.bf16.mxu0 %v881
      %945 = vmatpush1.bf16.msra.mxu0 %v880
      %946 = vmatprep.subr.bf16.mxu0 %v883
      %947 = vmatpush1.bf16.msra.mxu0 %v882
      %948 = vmatprep.subr.bf16.mxu0 %v885
      %949 = vmatpush1.bf16.msra.mxu0 %v884
      %950 = vmatprep.subr.bf16.mxu0 %v887
      %951 = vmatpush1.bf16.msra.mxu0 %v886
      %952 = vmatprep.subr.bf16.mxu0 %v889
      %953 = vmatpush1.bf16.msra.mxu0 %v888
      %954 = vmatprep.subr.bf16.mxu0 %v891
      %955 = vmatpush1.bf16.msra.mxu0 %v890
      %956 = vmatprep.subr.bf16.mxu0 %v893
      %957 = vmatpush1.bf16.msra.mxu0 %v892
      %958 = vmatprep.mubr.bf16.mxu0 %v708
      %959 = vmatmul.mubr.bf16.gmra.mrb[0].mxu0 %v707
      %v960 = vpop.f32.mrb[0].mxu0
      %v961 = vadd.f32 %v759, %v960
      %v962 = vpop.f32.mrb[0].mxu0
      %v963 = vadd.f32 %v763, %v962
      %v964 = vpop.f32.mrb[0].mxu0
      %v965 = vadd.f32 %v759, %v964
      %v966 = vpop.f32.mrb[0].mxu0
      %v967 = vadd.f32 %v763, %v966
      %968 = vmatprep.mubr.bf16.mxu0 %v710
      %969 = vmatmul.mubr.bf16.gmra.mrb[0].mxu0 %v709
      %v970 = vpop.f32.mrb[0].mxu0
      %v971 = vadd.f32 %v759, %v970
      %v972 = vpop.f32.mrb[0].mxu0
      %v973 = vadd.f32 %v763, %v972
      %v974 = vpop.f32.mrb[0].mxu0
      %v975 = vadd.f32 %v759, %v974
      %v976 = vpop.f32.mrb[0].mxu0
      %v977 = vadd.f32 %v763, %v976
      %978 = vmatprep.mubr.bf16.mxu0 %v712
      %979 = vmatmul.mubr.bf16.gmra.mrb[0].mxu0 %v711
      %v980 = vpop.f32.mrb[0].mxu0
      %v981 = vadd.f32 %v759, %v980
      %v982 = vpop.f32.mrb[0].mxu0
      %v983 = vadd.f32 %v763, %v982
      %v984 = vpop.f32.mrb[0].mxu0
      %v985 = vadd.f32 %v759, %v984
      %v986 = vpop.f32.mrb[0].mxu0
      %v987 = vadd.f32 %v763, %v986
      %988 = vmatprep.mubr.bf16.mxu0 %v714
      %989 = vmatmul.mubr.bf16.gmra.mrb[0].mxu0 %v713
      %v990 = vpop.f32.mrb[0].mxu0
      %v991 = vadd.f32 %v759, %v990
      %v992 = vpop.f32.mrb[0].mxu0
      %v993 = vadd.f32 %v763, %v992
      %v994 = vpop.f32.mrb[0].mxu0
      %v995 = vadd.f32 %v759, %v994
      %v996 = vpop.f32.mrb[0].mxu0
      %v997 = vadd.f32 %v763, %v996
      %998 = vmatprep.mubr.bf16.mxu0 %v716
      %999 = vmatmul.mubr.bf16.gmra.mrb[0].mxu0 %v715
      %v1000 = vpop.f32.mrb[0].mxu0
      %v1001 = vadd.f32 %v759, %v1000
      %v1002 = vpop.f32.mrb[0].mxu0
      %v1003 = vadd.f32 %v763, %v1002
      %v1004 = vpop.f32.mrb[0].mxu0
      %v1005 = vadd.f32 %v759, %v1004
      %v1006 = vpop.f32.mrb[0].mxu0
      %v1007 = vadd.f32 %v763, %v1006
      %1008 = vmatprep.mubr.bf16.mxu0 %v718
      %1009 = vmatmul.mubr.bf16.gmra.mrb[0].mxu0 %v717
      %v1010 = vpop.f32.mrb[0].mxu0
      %v1011 = vadd.f32 %v759, %v1010
      %v1012 = vpop.f32.mrb[0].mxu0
      %v1013 = vadd.f32 %v763, %v1012
      %v1014 = vpop.f32.mrb[0].mxu0
      %v1015 = vadd.f32 %v759, %v1014
      %v1016 = vpop.f32.mrb[0].mxu0
      %v1017 = vadd.f32 %v763, %v1016
      %1018 = vmatprep.mubr.bf16.mxu0 %v720
      %1019 = vmatmul.mubr.bf16.gmra.mrb[0].mxu0 %v719
      %v1020 = vpop.f32.mrb[0].mxu0
      %v1021 = vadd.f32 %v759, %v1020
      %v1022 = vpop.f32.mrb[0].mxu0
      %v1023 = vadd.f32 %v763, %v1022
      %v1024 = vpop.f32.mrb[0].mxu0
      %v1025 = vadd.f32 %v759, %v1024
      %v1026 = vpop.f32.mrb[0].mxu0
      %v1027 = vadd.f32 %v763, %v1026
      %1028 = vmatprep.mubr.bf16.mxu0 %v722
      %1029 = vmatmul.mubr.bf16.gmra.mrb[0].mxu0 %v721
      %v1030 = vpop.f32.mrb[0].mxu0
      %v1031 = vadd.f32 %v759, %v1030
      %v1032 = vpop.f32.mrb[0].mxu0
      %v1033 = vadd.f32 %v763, %v1032
      %v1034 = vpop.f32.mrb[0].mxu0
      %v1035 = vadd.f32 %v759, %v1034
      %v1036 = vpop.f32.mrb[0].mxu0
      %v1037 = vadd.f32 %v763, %v1036
      %1038 = vdwg.mxu0
      %v1039 = vmax.f32 %v961, 0.0
      %v1040 = vmax.f32 %v963, 0.0
      %v1041 = vmax.f32 %v965, 0.0
      %v1042 = vmax.f32 %v967, 0.0
      %v1043 = vmax.f32 %v971, 0.0
      %v1044 = vmax.f32 %v973, 0.0
      %v1045 = vmax.f32 %v975, 0.0
      %v1046 = vmax.f32 %v977, 0.0
      %v1047 = vmax.f32 %v981, 0.0
      %v1048 = vmax.f32 %v983, 0.0
      %v1049 = vmax.f32 %v985, 0.0
      %v1050 = vmax.f32 %v987, 0.0
      %v1051 = vmax.f32 %v991, 0.0
      %v1052 = vmax.f32 %v993, 0.0
      %v1053 = vmax.f32 %v995, 0.0
      %v1054 = vmax.f32 %v997, 0.0
      %v1055 = vmax.f32 %v1001, 0.0
      %v1056 = vmax.f32 %v1003, 0.0
      %v1057 = vmax.f32 %v1005, 0.0
      %v1058 = vmax.f32 %v1007, 0.0
      %v1059 = vmax.f32 %v1011, 0.0
      %v1060 = vmax.f32 %v1013, 0.0
      %v1061 = vmax.f32 %v1015, 0.0
      %v1062 = vmax.f32 %v1017, 0.0
      %v1063 = vmax.f32 %v1021, 0.0
      %v1064 = vmax.f32 %v1023, 0.0
      %v1065 = vmax.f32 %v1025, 0.0
      %v1066 = vmax.f32 %v1027, 0.0
      %v1067 = vmax.f32 %v1031, 0.0
      %v1068 = vmax.f32 %v1033, 0.0
      %v1069 = vmax.f32 %v1035, 0.0
      %v1070 = vmax.f32 %v1037, 0.0
      %v1071 = vpack.c.bf16 %v1041, %v1039
      %v1072 = vpack.c.bf16 %v1042, %v1040
      %v1073 = vpack.c.bf16 %v1045, %v1043
      %v1074 = vpack.c.bf16 %v1046, %v1044
      %v1075 = vpack.c.bf16 %v1049, %v1047
      %v1076 = vpack.c.bf16 %v1050, %v1048
      %v1077 = vpack.c.bf16 %v1053, %v1051
      %v1078 = vpack.c.bf16 %v1054, %v1052
      %v1079 = vpack.c.bf16 %v1057, %v1055
      %v1080 = vpack.c.bf16 %v1058, %v1056
      %v1081 = vpack.c.bf16 %v1061, %v1059
      %v1082 = vpack.c.bf16 %v1062, %v1060
      %v1083 = vpack.c.bf16 %v1065, %v1063
      %v1084 = vpack.c.bf16 %v1066, %v1064
      %v1085 = vpack.c.bf16 %v1069, %v1067
      %v1086 = vpack.c.bf16 %v1070, %v1068
      %v1087 = vld [vmem:[%s3] sm:$0xf]
      %v1088 = vld [vmem:[%s3 + $0x4] sm:$0xf]
      %v1089 = vld [vmem:[%s3 + $0x8] sm:$0xf]
      %v1090 = vld [vmem:[%s3 + $0xc] sm:$0xf]
      %v1091 = vld [vmem:[%s3 + $0x10] sm:$0xf]
      %v1092 = vld [vmem:[%s3 + $0x14] sm:$0xf]
      %v1093 = vld [vmem:[%s3 + $0x18] sm:$0xf]
      %v1094 = vld [vmem:[%s3 + $0x1c] sm:$0xf]
      %v1095 = vld [vmem:[%s3 + $0x20] sm:$0xf]
      %v1096 = vld [vmem:[%s3 + $0x24] sm:$0xf]
      %v1097 = vld [vmem:[%s3 + $0x28] sm:$0xf]
      %v1098 = vld [vmem:[%s3 + $0x2c] sm:$0xf]
      %v1099 = vld [vmem:[%s3 + $0x30] sm:$0xf]
      %v1100 = vld [vmem:[%s3 + $0x34] sm:$0xf]
      %v1101 = vld [vmem:[%s3 + $0x38] sm:$0xf]
      %v1102 = vld [vmem:[%s3 + $0x3c] sm:$0xf]
      %v1103 = vld [vmem:[%s3 + $0x40] sm:$0xf]
      %v1104 = vld [vmem:[%s3 + $0x44] sm:$0xf]
      %v1105 = vld [vmem:[%s3 + $0x48] sm:$0xf]
      %v1106 = vld [vmem:[%s3 + $0x4c] sm:$0xf]
      %v1107 = vld [vmem:[%s3 + $0x50] sm:$0xf]
      %v1108 = vld [vmem:[%s3 + $0x54] sm:$0xf]
      %v1109 = vld [vmem:[%s3 + $0x58] sm:$0xf]
      %v1110 = vld [vmem:[%s3 + $0x5c] sm:$0xf]
      %v1111 = vld [vmem:[%s3 + $0x60] sm:$0xf]
      %v1112 = vld [vmem:[%s3 + $0x64] sm:$0xf]
      %v1113 = vld [vmem:[%s3 + $0x68] sm:$0xf]
      %v1114 = vld [vmem:[%s3 + $0x6c] sm:$0xf]
      %v1115 = vld [vmem:[%s3 + $0x70] sm:$0xf]
      %v1116 = vld [vmem:[%s3 + $0x74] sm:$0xf]
      %v1117 = vld [vmem:[%s3 + $0x78] sm:$0xf]
      %v1118 = vld [vmem:[%s3 + $0x7c] sm:$0xf]
      %v1151 = vunpack.c.l.b16 %v1087
      %v1152 = vunpack.c.l.b16 %v1088
      %v1153 = vunpack.c.l.b16 %v1089
      %v1154 = vunpack.c.l.b16 %v1090
      %v1155 = vunpack.c.l.b16 %v1091
      %v1156 = vunpack.c.l.b16 %v1092
      %v1157 = vunpack.c.l.b16 %v1093
      %v1158 = vunpack.c.l.b16 %v1094
      %v1159 = vunpack.c.l.b16 %v1095
      %v1160 = vunpack.c.l.b16 %v1096
      %v1161 = vunpack.c.l.b16 %v1097
      %v1162 = vunpack.c.l.b16 %v1098
      %v1163 = vunpack.c.l.b16 %v1099
      %v1164 = vunpack.c.l.b16 %v1100
      %v1165 = vunpack.c.l.b16 %v1101
      %v1166 = vunpack.c.l.b16 %v1102
      %v1167 = vunpack.c.l.b16 %v1103
      %v1168 = vunpack.c.l.b16 %v1104
      %v1169 = vunpack.c.l.b16 %v1105
      %v1170 = vunpack.c.l.b16 %v1106
      %v1171 = vunpack.c.l.b16 %v1107
      %v1172 = vunpack.c.l.b16 %v1108
      %v1173 = vunpack.c.l.b16 %v1109
      %v1174 = vunpack.c.l.b16 %v1110
      %v1175 = vunpack.c.l.b16 %v1111
      %v1176 = vunpack.c.l.b16 %v1112
      %v1177 = vunpack.c.l.b16 %v1113
      %v1178 = vunpack.c.l.b16 %v1114
      %v1179 = vunpack.c.l.b16 %v1115
      %v1180 = vunpack.c.l.b16 %v1116
      %v1181 = vunpack.c.l.b16 %v1117
      %v1182 = vunpack.c.l.b16 %v1118
      %v1183 = vpack.c.b16 %v1152, %v1151
      %v1184 = vpack.c.b16 %v1154, %v1153
      %v1185 = vpack.c.b16 %v1156, %v1155
      %v1186 = vpack.c.b16 %v1158, %v1157
      %v1187 = vpack.c.b16 %v1160, %v1159
      %v1188 = vpack.c.b16 %v1162, %v1161
      %v1189 = vpack.c.b16 %v1164, %v1163
      %v1190 = vpack.c.b16 %v1166, %v1165
      %v1191 = vpack.c.b16 %v1168, %v1167
      %v1192 = vpack.c.b16 %v1170, %v1169
      %v1193 = vpack.c.b16 %v1172, %v1171
      %v1194 = vpack.c.b16 %v1174, %v1173
      %v1195 = vpack.c.b16 %v1176, %v1175
      %v1196 = vpack.c.b16 %v1178, %v1177
      %v1197 = vpack.c.b16 %v1180, %v1179
      %v1198 = vpack.c.b16 %v1182, %v1181
      %1215 = vmatprep.subr.bf16.mxu0 0
      %1216 = vmatpush1.bf16.msra.mxu0 %v1183
      %1217 = vmatprep.subr.bf16.mxu0 0
      %1218 = vmatpush1.bf16.msra.mxu0 %v1184
      %1219 = vmatprep.subr.bf16.mxu0 0
      %1220 = vmatpush1.bf16.msra.mxu0 %v1185
      %1221 = vmatprep.subr.bf16.mxu0 0
      %1222 = vmatpush1.bf16.msra.mxu0 %v1186
      %1223 = vmatprep.subr.bf16.mxu0 0
      %1224 = vmatpush1.bf16.msra.mxu0 %v1187
      %1225 = vmatprep.subr.bf16.mxu0 0
      %1226 = vmatpush1.bf16.msra.mxu0 %v1188
      %1227 = vmatprep.subr.bf16.mxu0 0
      %1228 = vmatpush1.bf16.msra.mxu0 %v1189
      %1229 = vmatprep.subr.bf16.mxu0 0
      %1230 = vmatpush1.bf16.msra.mxu0 %v1190
      %1231 = vmatprep.subr.bf16.mxu0 0
      %1232 = vmatpush1.bf16.msra.mxu0 %v1191
      %1233 = vmatprep.subr.bf16.mxu0 0
      %1234 = vmatpush1.bf16.msra.mxu0 %v1192
      %1235 = vmatprep.subr.bf16.mxu0 0
      %1236 = vmatpush1.bf16.msra.mxu0 %v1193
      %1237 = vmatprep.subr.bf16.mxu0 0
      %1238 = vmatpush1.bf16.msra.mxu0 %v1194
      %1239 = vmatprep.subr.bf16.mxu0 0
      %1240 = vmatpush1.bf16.msra.mxu0 %v1195
      %1241 = vmatprep.subr.bf16.mxu0 0
      %1242 = vmatpush1.bf16.msra.mxu0 %v1196
      %1243 = vmatprep.subr.bf16.mxu0 0
      %1244 = vmatpush1.bf16.msra.mxu0 %v1197
      %1245 = vmatprep.subr.bf16.mxu0 0
      %1246 = vmatpush1.bf16.msra.mxu0 %v1198
      %1247 = vmatprep.mubr.bf16.mxu0 %v1072
      %1248 = vmatmul.mubr.bf16.gmra.mrb[0].mxu0 %v1071
      %v1249 = vpop.f32.mrb[0].mxu0
      %v1250 = vadd.f32 %v249, %v1249
      %v1251 = vpop.f32.mrb[0].mxu0
      %v1252 = vpop.f32.mrb[0].mxu0
      %v1253 = vadd.f32 %v249, %v1252
      %v1254 = vpop.f32.mrb[0].mxu0
      %1255 = vmatprep.mubr.bf16.mxu0 %v1074
      %1256 = vmatmul.mubr.bf16.gmra.mrb[0].mxu0 %v1073
      %v1257 = vpop.f32.mrb[0].mxu0
      %v1258 = vadd.f32 %v249, %v1257
      %v1259 = vpop.f32.mrb[0].mxu0
      %v1260 = vpop.f32.mrb[0].mxu0
      %v1261 = vadd.f32 %v249, %v1260
      %v1262 = vpop.f32.mrb[0].mxu0
      %1263 = vmatprep.mubr.bf16.mxu0 %v1076
      %1264 = vmatmul.mubr.bf16.gmra.mrb[0].mxu0 %v1075
      %v1265 = vpop.f32.mrb[0].mxu0
      %v1266 = vadd.f32 %v249, %v1265
      %v1267 = vpop.f32.mrb[0].mxu0
      %v1268 = vpop.f32.mrb[0].mxu0
      %v1269 = vadd.f32 %v249, %v1268
      %v1270 = vpop.f32.mrb[0].mxu0
      %1271 = vmatprep.mubr.bf16.mxu0 %v1078
      %1272 = vmatmul.mubr.bf16.gmra.mrb[0].mxu0 %v1077
      %v1273 = vpop.f32.mrb[0].mxu0
      %v1274 = vadd.f32 %v249, %v1273
      %v1275 = vpop.f32.mrb[0].mxu0
      %v1276 = vpop.f32.mrb[0].mxu0
      %v1277 = vadd.f32 %v249, %v1276
      %v1278 = vpop.f32.mrb[0].mxu0
      %1279 = vmatprep.mubr.bf16.mxu0 %v1080
      %1280 = vmatmul.mubr.bf16.gmra.mrb[0].mxu0 %v1079
      %v1281 = vpop.f32.mrb[0].mxu0
      %v1282 = vadd.f32 %v249, %v1281
      %v1283 = vpop.f32.mrb[0].mxu0
      %v1284 = vpop.f32.mrb[0].mxu0
      %v1285 = vadd.f32 %v249, %v1284
      %v1286 = vpop.f32.mrb[0].mxu0
      %1287 = vmatprep.mubr.bf16.mxu0 %v1082
      %1288 = vmatmul.mubr.bf16.gmra.mrb[0].mxu0 %v1081
      %v1289 = vpop.f32.mrb[0].mxu0
      %v1290 = vadd.f32 %v249, %v1289
      %v1291 = vpop.f32.mrb[0].mxu0
      %v1292 = vpop.f32.mrb[0].mxu0
      %v1293 = vadd.f32 %v249, %v1292
      %v1294 = vpop.f32.mrb[0].mxu0
      %1295 = vmatprep.mubr.bf16.mxu0 %v1084
      %1296 = vmatmul.mubr.bf16.gmra.mrb[0].mxu0 %v1083
      %v1297 = vpop.f32.mrb[0].mxu0
      %v1298 = vadd.f32 %v249, %v1297
      %v1299 = vpop.f32.mrb[0].mxu0
      %v1300 = vpop.f32.mrb[0].mxu0
      %v1301 = vadd.f32 %v249, %v1300
      %v1302 = vpop.f32.mrb[0].mxu0
      %1303 = vmatprep.mubr.bf16.mxu0 %v1086
      %1304 = vmatmul.mubr.bf16.gmra.mrb[0].mxu0 %v1085
      %v1305 = vpop.f32.mrb[0].mxu0
      %v1306 = vadd.f32 %v249, %v1305
      %v1307 = vpop.f32.mrb[0].mxu0
      %v1308 = vpop.f32.mrb[0].mxu0
      %v1309 = vadd.f32 %v249, %v1308
      %v1310 = vpop.f32.mrb[0].mxu0
      %1311 = vdwg.mxu0
      %v1312 = vtanh.pop %v1250
      %v1313 = vtanh.pop %v1253
      %v1314 = vtanh.pop %v1258
      %v1315 = vtanh.pop %v1261
      %v1316 = vtanh.pop %v1266
      %v1317 = vtanh.pop %v1269
      %v1318 = vtanh.pop %v1274
      %v1319 = vtanh.pop %v1277
      %v1320 = vtanh.pop %v1282
      %v1321 = vtanh.pop %v1285
      %v1322 = vtanh.pop %v1290
      %v1323 = vtanh.pop %v1293
      %v1324 = vtanh.pop %v1298
      %v1325 = vtanh.pop %v1301
      %v1326 = vtanh.pop %v1306
      %v1327 = vtanh.pop %v1309
      %vm1328 = vcmask 31744
      %1329 = vst.msk [vmem:[%s224] sm:$0xff] %vm1328, %v1312
      %1330 = vst.msk [vmem:[%s224 + $0x8] sm:$0xff] %vm1328, %v1313
      %1331 = vst.msk [vmem:[%s224 + $0x10] sm:$0xff] %vm1328, %v1314
      %1332 = vst.msk [vmem:[%s224 + $0x18] sm:$0xff] %vm1328, %v1315
      %1333 = vst.msk [vmem:[%s224 + $0x20] sm:$0xff] %vm1328, %v1316
      %1334 = vst.msk [vmem:[%s224 + $0x28] sm:$0xff] %vm1328, %v1317
      %1335 = vst.msk [vmem:[%s224 + $0x30] sm:$0xff] %vm1328, %v1318
      %1336 = vst.msk [vmem:[%s224 + $0x38] sm:$0xff] %vm1328, %v1319
      %1337 = vst.msk [vmem:[%s224 + $0x40] sm:$0xff] %vm1328, %v1320
      %1338 = vst.msk [vmem:[%s224 + $0x48] sm:$0xff] %vm1328, %v1321
      %1339 = vst.msk [vmem:[%s224 + $0x50] sm:$0xff] %vm1328, %v1322
      %1340 = vst.msk [vmem:[%s224 + $0x58] sm:$0xff] %vm1328, %v1323
      %1341 = vst.msk [vmem:[%s224 + $0x60] sm:$0xff] %vm1328, %v1324
      %1342 = vst.msk [vmem:[%s224 + $0x68] sm:$0xff] %vm1328, %v1325
      %1343 = vst.msk [vmem:[%s224 + $0x70] sm:$0xff] %vm1328, %v1326
      %1344 = vst.msk [vmem:[%s224 + $0x78] sm:$0xff] %vm1328, %v1327
      %p1345 = scmp.lt.s32.totalorder %s16, 3
      %s1346 = scalar_select %p1345, %s16, 3
      %s1347 = smul.addr %s1346, 16
      %s1348 = smul.addr %s1347, 8
      %s1349 = scalar_lea.vmem %s5, %s1348
      // Predicated region
      $region41: #{actor_forward_steps.1} parent=39 // pred_check
        %p1350 = pneg %p144
      $region42: #{actor_forward_steps.1} parent=39 // pred_check_branch
        %1352 = sbr.rel (%p1350) target = $region44
      $region43: #{actor_forward_steps.1} parent=39 // pred_region
        _
      $region44: #{actor_forward_steps.1} parent=39 // pred_fallthru
        _
    $region40: #{actor_forward_steps.1} parent=5 // pred_fallthru
      _
    %p1353 = scmp.le.s32.totalorder 2, %s11
    // Predicated region
    $region45: #{actor_forward_steps.1} parent=5 // pred_check
      %p1354 = pneg %p1353
    $region46: #{actor_forward_steps.1} parent=5 // pred_check_branch
      %1356 = sbr.rel (%p1354) target = $region48
    $region47: #{actor_forward_steps.1} parent=5 // pred_region
      %s1357 = ssub.s32 %s11, 2
      // Predicated region
      $region49: #{actor_forward_steps.1} parent=47 // pred_check
        %p1358 = pneg %p150
      $region50: #{actor_forward_steps.1} parent=47 // pred_check_branch
        %1360 = sbr.rel (%p1358) target = $region52
      $region51: #{actor_forward_steps.1} parent=47 // pred_region
        %p1361 = scmp.lt.s32.totalorder %s17, 3
        %s1362 = scalar_select %p1361, %s17, 3
        %s1363 = smul.addr %s1362, 16
        %s1364 = smul.addr %s1363, 8
        %s1365 = scalar_lea.vmem %s5, %s1364
      $region52: #{actor_forward_steps.1} parent=47 // pred_fallthru
        _
    $region48: #{actor_forward_steps.1} parent=5 // pred_fallthru
      _
  $region6: #{actor_forward_steps.1} parent=0 // loop_footer
    %s15 = sadd.s32 1, %s11
  $region7: #{actor_forward_steps.1} parent=0 // loop_footer_branch
    %10 = sbr.rel target = $region3
  $region8: #{actor_forward_steps.1} parent=0 // loop_exit
    _

</llo_original>
